<compile_context>
chip_gen: v5e
topology: v5e:2x2
jax: 0.10.0
libtpu: 0.0.40
codegen_flags: <defaults>
</compile_context>

<pallas_src>
import functools

import jax
import jax.numpy as jnp
from jax import lax
from jax.experimental import pallas as pl
from jax.experimental.pallas import tpu as pltpu

ACT_DTYPE = jnp.bfloat16            # MXU input / activation storage dtype
VMEM_LIMIT = 32 * 1024 * 1024       # explicit scoped-VMEM budget (ok on v5e..v7x)
BN_EPS = 1e-5


def _compiler_params(sem):
    return pltpu.CompilerParams(dimension_semantics=sem,
                                vmem_limit_bytes=VMEM_LIMIT)


# ---------------------------------------------------------------------------
# Kernel 1: row-tiled  y = [relu](x @ w + b)
# Used for the stem conv (after an im2col that gives K = 7*7*3 = 147) and for
# the stride-1 1x1 conv of the three stride-2 bottleneck blocks.
# ---------------------------------------------------------------------------
def _dense_kernel(x_ref, w_ref, b_ref, o_ref, *, relu):
    y = jnp.dot(x_ref[...], w_ref[...], preferred_element_type=jnp.float32)
    y = y + b_ref[...]
    if relu:
        y = jnp.maximum(y, 0.0)
    o_ref[...] = y.astype(o_ref.dtype)


@functools.lru_cache(maxsize=None)
def _dense_call(R, K, N, relu):
    tr = 256 if R % 256 == 0 else R          # row tile (always a multiple of 8)
    assert R % tr == 0 and tr % 8 == 0
    return jax.jit(pl.pallas_call(
        functools.partial(_dense_kernel, relu=relu),
        out_shape=jax.ShapeDtypeStruct((R, N), ACT_DTYPE),
        grid_spec=pltpu.PrefetchScalarGridSpec(
            num_scalar_prefetch=0,
            grid=(R // tr,),
            in_specs=[pl.BlockSpec((tr, K), lambda i: (i, 0)),
                      pl.BlockSpec((K, N), lambda i: (0, 0)),
                      pl.BlockSpec((1, N), lambda i: (0, 0))],
            out_specs=pl.BlockSpec((tr, N), lambda i: (i, 0))),
        compiler_params=_compiler_params(("parallel",)),
    ))


def dense(x_rows, w, b, *, relu):
    R, K = x_rows.shape
    N = w.shape[1]
    return _dense_call(R, K, N, relu)(x_rows, w, b)


# ---------------------------------------------------------------------------
# Kernel 2: fused stride-1 Bottleneck block
#   out = relu( conv1x1(relu(conv3x3(relu(conv1x1(x))))) + residual )
# BN is folded into the weights; residual is identity or a 1x1 projection.
# One grid step per image (batch axis is "parallel"); all H*W rows of the image
# are folded into the GEMM M dimension.
# ---------------------------------------------------------------------------
def _bottleneck_s1_kernel(x_ref, w1_ref, b1_ref, w2_ref, b2_ref,
                          w3_ref, b3_ref, *rest, downsample):
    if downsample:
        wd_ref, bd_ref, o_ref, pad_ref = rest
    else:
        o_ref, pad_ref = rest
    _, H, W, cin = x_ref.shape
    width = w1_ref.shape[1]
    cout = w3_ref.shape[1]
    rows = H * W

    x_rows = x_ref[0].reshape(rows, cin)                        # bf16

    # conv1 (1x1, BN folded) + ReLU -- all H*W rows as one GEMM.
    y1 = jnp.dot(x_rows, w1_ref[...], preferred_element_type=jnp.float32)
    y1 = jnp.maximum(y1 + b1_ref[...], 0.0).astype(ACT_DTYPE)

    # Stage y1 into the padded VMEM scratch for the 3x3 conv.  Only the 1-px
    # border needs zeros; the interior is fully overwritten every step.
    zrow = jnp.zeros((1, W + 2, width), ACT_DTYPE)
    zcol = jnp.zeros((H, 1, width), ACT_DTYPE)
    pad_ref[0:1, :, :] = zrow
    pad_ref[H + 1:H + 2, :, :] = zrow
    pad_ref[1:H + 1, 0:1, :] = zcol
    pad_ref[1:H + 1, W + 1:W + 2, :] = zcol
    pad_ref[1:H + 1, 1:W + 1, :] = y1.reshape(H, W, width)

    # conv2 (3x3 stride 1, BN folded) + ReLU: 3 MXU calls with K = 3*width
    # (the three kx taps concatenated on the contraction axis).
    # TODO(synk): at full ResNet spatial sizes, tile `rows` here so the f32
    # accumulator stays within the vreg file instead of spilling.
    acc = jnp.zeros((rows, width), jnp.float32)
    for ky in range(3):
        slab = pad_ref[ky:ky + H, :, :]                         # (H, W+2, width)
        patch = jnp.concatenate(
            [slab[:, 0:W, :], slab[:, 1:W + 1, :], slab[:, 2:W + 2, :]],
            axis=-1).reshape(rows, 3 * width)
        acc = acc + jnp.dot(patch, w2_ref[ky],
                            preferred_element_type=jnp.float32)
    y2 = jnp.maximum(acc + b2_ref[...], 0.0).astype(ACT_DTYPE)

    # conv3 (1x1, BN folded) + residual + ReLU.
    y3 = jnp.dot(y2, w3_ref[...], preferred_element_type=jnp.float32)
    y3 = y3 + b3_ref[...]
    if downsample:
        res = jnp.dot(x_rows, wd_ref[...], preferred_element_type=jnp.float32)
        res = res + bd_ref[...]
    else:
        res = x_rows.astype(jnp.float32)
    out = jnp.maximum(y3 + res, 0.0)
    o_ref[0] = out.reshape(H, W, cout).astype(o_ref.dtype)


@functools.lru_cache(maxsize=None)
def _bottleneck_s1_call(B, H, W, cin, width, cout, downsample):
    in_specs = [
        pl.BlockSpec((1, H, W, cin), lambda b: (b, 0, 0, 0)),
        pl.BlockSpec((cin, width), lambda b: (0, 0)),
        pl.BlockSpec((1, width), lambda b: (0, 0)),
        pl.BlockSpec((3, 3 * width, width), lambda b: (0, 0, 0)),
        pl.BlockSpec((1, width), lambda b: (0, 0)),
        pl.BlockSpec((width, cout), lambda b: (0, 0)),
        pl.BlockSpec((1, cout), lambda b: (0, 0)),
    ]
    if downsample:
        in_specs += [pl.BlockSpec((cin, cout), lambda b: (0, 0)),
                     pl.BlockSpec((1, cout), lambda b: (0, 0))]
    return jax.jit(pl.pallas_call(
        functools.partial(_bottleneck_s1_kernel, downsample=downsample),
        out_shape=jax.ShapeDtypeStruct((B, H, W, cout), ACT_DTYPE),
        grid_spec=pltpu.PrefetchScalarGridSpec(
            num_scalar_prefetch=0,
            grid=(B,),
            in_specs=in_specs,
            out_specs=pl.BlockSpec((1, H, W, cout), lambda b: (b, 0, 0, 0)),
            scratch_shapes=[pltpu.VMEM((H + 2, W + 2, width), ACT_DTYPE)]),
        compiler_params=_compiler_params(("parallel",)),
    ))


def bottleneck_s1(x, p):
    B, H, W, cin = x.shape
    width = p['w1'].shape[1]
    cout = p['w3'].shape[1]
    downsample = 'wd' in p
    args = [x, p['w1'], p['b1'], p['w2'], p['b2'], p['w3'], p['b3']]
    if downsample:
        args += [p['wd'], p['bd']]
    return _bottleneck_s1_call(B, H, W, cin, width, cout, downsample)(*args)


# ---------------------------------------------------------------------------
# Kernel 3: tail of a stride-2 Bottleneck block (first block of layer2/3/4).
# The wrapper runs the stride-1 1x1 conv via `dense`, then does a stride-2
# im2col in XLA (layout plumbing only) so this kernel is pure lane-dense GEMMs:
#   y2 = relu(cols @ W2cat + b2);  out = relu(y2 @ W3 + b3 + x_ds @ Wd + bd)
# ---------------------------------------------------------------------------
def _bottleneck_s2_tail_kernel(cols_ref, xds_ref, w2_ref, b2_ref,
                               w3_ref, b3_ref, wd_ref, bd_ref, o_ref):
    _, ho, wo, k9 = cols_ref.shape
    cin = xds_ref.shape[3]
    cout = w3_ref.shape[1]
    rows = ho * wo

    cols = cols_ref[0].reshape(rows, k9)
    y2 = jnp.dot(cols, w2_ref[...], preferred_element_type=jnp.float32)
    y2 = jnp.maximum(y2 + b2_ref[...], 0.0).astype(ACT_DTYPE)

    y3 = jnp.dot(y2, w3_ref[...], preferred_element_type=jnp.float32)
    y3 = y3 + b3_ref[...]

    xds = xds_ref[0].reshape(rows, cin)
    res = jnp.dot(xds, wd_ref[...], preferred_element_type=jnp.float32)
    res = res + bd_ref[...]

    out = jnp.maximum(y3 + res, 0.0)
    o_ref[0] = out.reshape(ho, wo, cout).astype(o_ref.dtype)


@functools.lru_cache(maxsize=None)
def _bottleneck_s2_tail_call(B, ho, wo, cin, width, cout):
    return jax.jit(pl.pallas_call(
        _bottleneck_s2_tail_kernel,
        out_shape=jax.ShapeDtypeStruct((B, ho, wo, cout), ACT_DTYPE),
        grid_spec=pltpu.PrefetchScalarGridSpec(
            num_scalar_prefetch=0,
            grid=(B,),
            in_specs=[
                pl.BlockSpec((1, ho, wo, 9 * width), lambda b: (b, 0, 0, 0)),
                pl.BlockSpec((1, ho, wo, cin), lambda b: (b, 0, 0, 0)),
                pl.BlockSpec((9 * width, width), lambda b: (0, 0)),
                pl.BlockSpec((1, width), lambda b: (0, 0)),
                pl.BlockSpec((width, cout), lambda b: (0, 0)),
                pl.BlockSpec((1, cout), lambda b: (0, 0)),
                pl.BlockSpec((cin, cout), lambda b: (0, 0)),
                pl.BlockSpec((1, cout), lambda b: (0, 0)),
            ],
            out_specs=pl.BlockSpec((1, ho, wo, cout), lambda b: (b, 0, 0, 0))),
        compiler_params=_compiler_params(("parallel",)),
    ))


def bottleneck_s2(x, p):
    B, H, W, cin = x.shape
    width = p['b1'].shape[1]
    cout = p['w3'].shape[1]
    ho, wo = H // 2, W // 2

    # conv1 (1x1, stride 1) + BN + ReLU as a row-tiled dense kernel (M = B*H*W).
    y1 = dense(x.reshape(B * H * W, cin), p['w1'], p['b1'], relu=True)
    y1 = y1.reshape(B, H, W, width)

    # Stride-2 im2col in XLA (layout plumbing, not compute): K = 9*width.
    y1p = jnp.pad(y1, ((0, 0), (1, 1), (1, 1), (0, 0)))
    cols = jnp.concatenate(
        [y1p[:, ky:ky + H:2, kx:kx + W:2, :]
         for ky in range(3) for kx in range(3)], axis=-1)   # (B, ho, wo, 9*width)
    x_ds = x[:, ::2, ::2, :]                                # stride-2 1x1 input

    return _bottleneck_s2_tail_call(B, ho, wo, cin, width, cout)(
        cols, x_ds, p['w2cat'], p['b2'], p['w3'], p['b3'], p['wd'], p['bd'])


# ---------------------------------------------------------------------------
# Kernel 4: maxpool over 9 pre-gathered taps (3x3 / stride 2 / pad 1)
# ---------------------------------------------------------------------------
def _maxpool9_kernel(t_ref, o_ref):
    hp = o_ref.shape[1]
    m = t_ref[0, 0:hp, :, :]
    for k in range(1, 9):
        m = jnp.maximum(m, t_ref[0, k * hp:(k + 1) * hp, :, :])
    o_ref[0] = m


@functools.lru_cache(maxsize=None)
def _maxpool9_call(B, hp, wp, C):
    return jax.jit(pl.pallas_call(
        _maxpool9_kernel,
        out_shape=jax.ShapeDtypeStruct((B, hp, wp, C), ACT_DTYPE),
        grid_spec=pltpu.PrefetchScalarGridSpec(
            num_scalar_prefetch=0,
            grid=(B,),
            in_specs=[pl.BlockSpec((1, 9 * hp, wp, C), lambda b: (b, 0, 0, 0))],
            out_specs=pl.BlockSpec((1, hp, wp, C), lambda b: (b, 0, 0, 0))),
        compiler_params=_compiler_params(("parallel",)),
    ))


# ---------------------------------------------------------------------------
# Kernel 5: global average pool  (B, H*W, C) -> (B, C) in f32
# ---------------------------------------------------------------------------
def _avgpool_kernel(x_ref, o_ref):
    hw = x_ref.shape[1]
    v = x_ref[...].astype(jnp.float32)
    acc = v[:, 0, :]
    for k in range(1, hw):
        acc = acc + v[:, k, :]
    o_ref[...] = acc * (1.0 / hw)


@functools.lru_cache(maxsize=None)
def _avgpool_call(B, HW, C):
    return jax.jit(pl.pallas_call(
        _avgpool_kernel,
        out_shape=jax.ShapeDtypeStruct((B, C), jnp.float32),
        grid_spec=pltpu.PrefetchScalarGridSpec(
            num_scalar_prefetch=0,
            grid=(1,),
            in_specs=[pl.BlockSpec((B, HW, C), lambda i: (0, 0, 0))],
            out_specs=pl.BlockSpec((B, C), lambda i: (0, 0))),
        compiler_params=_compiler_params(("arbitrary",)),
    ))


def global_avgpool(x):
    B, H, W, C = x.shape
    return _avgpool_call(B, H * W, C)(x.reshape(B, H * W, C))


# ---------------------------------------------------------------------------
# Stem: conv1 7x7/2 (+BN, ReLU) + maxpool 3x3/2.  The 7x7/2 conv is im2col'ed
# in the wrapper (Cin=3 is hopeless on the lane axis) so the kernel sees one
# GEMM with K = 7*7*3 = 147.
# ---------------------------------------------------------------------------
def stem_forward(x, p):
    B, H, W, _ = x.shape
    ho, wo = H // 2, W // 2
    xp = jnp.pad(x, ((0, 0), (3, 3), (3, 3), (0, 0)))
    cols = jnp.concatenate(
        [xp[:, ky:ky + H:2, kx:kx + W:2, :]
         for ky in range(7) for kx in range(7)], axis=-1)   # (B, ho, wo, 147)
    y = dense(cols.reshape(B * ho * wo, 7 * 7 * 3), p['w'], p['b'], relu=True)
    y = y.reshape(B, ho, wo, 64)

    # maxpool 3x3 / stride 2 / pad 1 (input is post-ReLU, so 0-pad == -inf pad).
    hp, wp = ho // 2, wo // 2
    yp = jnp.pad(y, ((0, 0), (1, 1), (1, 1), (0, 0)))
    taps = jnp.concatenate(
        [yp[:, ky:ky + ho:2, kx:kx + wo:2, :]
         for ky in range(3) for kx in range(3)], axis=1)    # (B, 9*hp, wp, 64)
    return _maxpool9_call(B, hp, wp, 64)(taps)


def resbase101_forward(params, x_nchw):
    x = jnp.transpose(x_nchw, (0, 2, 3, 1)).astype(ACT_DTYPE)   # NCHW -> NHWC
    x = stem_forward(x, params['stem'])
    for blocks in params['layers']:
        for p in blocks:
            x = bottleneck_s2(x, p) if 'w2cat' in p else bottleneck_s1(x, p)
    return global_avgpool(x)      # == AdaptiveAvgPool2d((1,1)) + flatten


# ---------------------------------------------------------------------------
# Parameter construction (He init + random BN stats folded into the weights)
# ---------------------------------------------------------------------------
def _he(key, shape, fan_in):
    return jax.random.normal(key, shape, jnp.float32) * jnp.sqrt(2.0 / fan_in)


def _bn(key, c):
    kg, kb, km, kv = jax.random.split(key, 4)
    gamma = 0.5 + 0.1 * jax.random.normal(kg, (c,), jnp.float32)
    beta = 0.05 * jax.random.normal(kb, (c,), jnp.float32)
    mean = 0.05 * jax.random.normal(km, (c,), jnp.float32)
    var = 1.0 + 0.1 * jnp.abs(jax.random.normal(kv, (c,), jnp.float32))
    return gamma, beta, mean, var


def _fold_bn(w, bn):
    gamma, beta, mean, var = bn
    scale = gamma / jnp.sqrt(var + BN_EPS)
    w_f = (w * scale).astype(ACT_DTYPE)                     # scale -> out channels
    b_f = (beta - mean * scale).astype(jnp.float32).reshape(1, -1)
    return w_f, b_f


def make_stem_params(key):
    k1, k2 = jax.random.split(key)
    w = _he(k1, (7, 7, 3, 64), 7 * 7 * 3)
    w, b = _fold_bn(w, _bn(k2, 64))
    return dict(w_hwio=w, w=w.reshape(7 * 7 * 3, 64), b=b)


def make_block_params(key, cin, width, stride, downsample):
    cout = 4 * width
    k = jax.random.split(key, 8)
    w1 = _he(k[0], (cin, width), cin)                        # 1x1
    w2 = _he(k[1], (3, 3, width, width), 9 * width)          # 3x3 (HWIO)
    w3 = _he(k[2], (width, cout), width)                     # 1x1
    w1, b1 = _fold_bn(w1, _bn(k[3], width))
    w2, b2 = _fold_bn(w2, _bn(k[4], width))
    w3, b3 = _fold_bn(w3, _bn(k[5], cout))
    p = dict(w1=w1, b1=b1, b2=b2, w3=w3, b3=b3, w2_hwio=w2)
    if stride == 1:
        p['w2'] = w2.reshape(3, 3 * width, width)            # per-ky, K = 3*width
    else:
        p['w2cat'] = w2.reshape(9 * width, width)            # full im2col weight
    if downsample:
        wd = _he(k[6], (cin, cout), cin)
        p['wd'], p['bd'] = _fold_bn(wd, _bn(k[7], cout))
    return p


def make_resbase101_params(key):
    cfg = [(64, 3, 1), (128, 4, 2), (256, 23, 2), (512, 3, 2)]   # resnet101
    keys = jax.random.split(key, sum(n for _, n, _ in cfg) + 1)
    params = dict(stem=make_stem_params(keys[0]), layers=[])
    cin, ki = 64, 1
    for width, nblocks, stride in cfg:
        blocks = []
        for i in range(nblocks):
            s = stride if i == 0 else 1
            blocks.append(make_block_params(keys[ki], cin, width, s, i == 0))
            cin = 4 * width
            ki += 1
        params['layers'].append(blocks)
    return params


# ---------------------------------------------------------------------------
# Pure-XLA reference (same folded weights and bf16 rounding points)
# ---------------------------------------------------------------------------
def _conv_ref(x, w_hwio, stride, pad):
    return lax.conv_general_dilated(
        x, w_hwio, (stride, stride), pad,
        dimension_numbers=("NHWC", "HWIO", "NHWC"),
        preferred_element_type=jnp.float32)


def _bias(b):
    return b.reshape(1, 1, 1, -1)


def reference_forward(params, x_nchw):
    x = jnp.transpose(x_nchw, (0, 2, 3, 1)).astype(ACT_DTYPE)
    sp = params['stem']
    y = _conv_ref(x, sp['w_hwio'], 2, [(3, 3), (3, 3)]) + _bias(sp['b'])
    y = jnp.maximum(y, 0.0).astype(ACT_DTYPE)
    x = lax.reduce_window(y, jnp.array(-jnp.inf, ACT_DTYPE), lax.max,
                          (1, 3, 3, 1), (1, 2, 2, 1),
                          [(0, 0), (1, 1), (1, 1), (0, 0)])
    for blocks in params['layers']:
        for p in blocks:
            stride = 2 if 'w2cat' in p else 1
            cin = p['w1'].shape[0]
            width = p['b1'].shape[1]
            cout = p['w3'].shape[1]
            y = _conv_ref(x, p['w1'].reshape(1, 1, cin, width), 1,
                          [(0, 0), (0, 0)]) + _bias(p['b1'])
            y = jnp.maximum(y, 0.0).astype(ACT_DTYPE)
            y = _conv_ref(y, p['w2_hwio'], stride,
                          [(1, 1), (1, 1)]) + _bias(p['b2'])
            y = jnp.maximum(y, 0.0).astype(ACT_DTYPE)
            y = _conv_ref(y, p['w3'].reshape(1, 1, width, cout), 1,
                          [(0, 0), (0, 0)]) + _bias(p['b3'])
            if 'wd' in p:
                r = _conv_ref(x, p['wd'].reshape(1, 1, cin, cout), stride,
                              [(0, 0), (0, 0)]) + _bias(p['bd'])
            else:
                r = x.astype(jnp.float32)
            x = jnp.maximum(y + r, 0.0).astype(ACT_DTYPE)
    return jnp.mean(x.astype(jnp.float32), axis=(1, 2))


if __name__ == "__main__":
    key = jax.random.PRNGKey(0)
    kp, kx = jax.random.split(key)
    params = make_resbase101_params(kp)

    # Small ImageNet-style input: batch 2, 3 channels, 64x64 spatial.
    B, C, H, W = 2, 3, 64, 64
    x = jax.random.normal(kx, (B, C, H, W), dtype=jnp.float32)

    feats = jax.block_until_ready(resbase101_forward(params, x))
    assert feats.shape == (B, 2048), feats.shape

    ref = jax.block_until_ready(reference_forward(params, x))
    err = float(jnp.max(jnp.abs(feats - ref)))
    scale = float(jnp.max(jnp.abs(ref))) + 1e-6
    assert err <= 3e-2 * scale + 3e-2, f"max abs err {err} vs ref scale {scale}"

    print("KERNEL_OK")
</pallas_src>

<mosaic_0001>
module attributes {stable_mosaic.version = 11 : i64} {
  func.func @_dense_kernel(%arg0: i32, %arg1: memref<256x147xbf16, #tpu.memory_space<vmem>>, %arg2: memref<147x64xbf16, #tpu.memory_space<vmem>>, %arg3: memref<1x64xf32, #tpu.memory_space<vmem>>, %arg4: memref<256x64xbf16, #tpu.memory_space<vmem>>) attributes {dimension_semantics = [#tpu.dimension_semantics<parallel>], iteration_bounds = array<i64: 8>, scalar_prefetch = 0 : i64, scratch_operands = 0 : i64, tpu.core_type = #tpu.core_type<tc>, window_params = [{transform_indices = @transform_0, window_bounds = array<i64: 256, 147>}, {pipeline_mode = #tpu.pipeline_mode<synchronous>, transform_indices = @transform_1, window_bounds = array<i64: 147, 64>}, {pipeline_mode = #tpu.pipeline_mode<synchronous>, transform_indices = @transform_2, window_bounds = array<i64: 1, 64>}, {transform_indices = @transform_3, window_bounds = array<i64: 256, 64>}]} {
    %c0 = arith.constant 0 : index
    %c0_0 = arith.constant 0 : index
    %0 = vector.load %arg1[%c0, %c0_0] : memref<256x147xbf16, #tpu.memory_space<vmem>>, vector<256x147xbf16>
    %c0_1 = arith.constant 0 : index
    %c0_2 = arith.constant 0 : index
    %1 = vector.load %arg2[%c0_1, %c0_2] : memref<147x64xbf16, #tpu.memory_space<vmem>>, vector<147x64xbf16>
    %cst = arith.constant dense<0.000000e+00> : vector<256x64xf32>
    %2 = tpu.matmul %0, %1, %cst {dimension_numbers = #tpu.dot_dimension_numbers<[1], [0], [0], [1], [0, 0, 1, 1], [], []>} : vector<256x147xbf16>, vector<147x64xbf16>, vector<256x64xf32> -> vector<256x64xf32>
    %c0_3 = arith.constant 0 : index
    %c0_4 = arith.constant 0 : index
    %3 = vector.load %arg3[%c0_3, %c0_4] : memref<1x64xf32, #tpu.memory_space<vmem>>, vector<1x64xf32>
    %4 = vector.broadcast %3 : vector<1x64xf32> to vector<256x64xf32>
    %5 = arith.addf %2, %4 : vector<256x64xf32>
    %cst_5 = arith.constant 0.000000e+00 : f32
    %6 = vector.broadcast %cst_5 : f32 to vector<256x64xf32>
    %7 = arith.maximumf %5, %6 : vector<256x64xf32>
    %8 = arith.truncf %7 : vector<256x64xf32> to vector<256x64xbf16>
    %c0_6 = arith.constant 0 : index
    %c0_7 = arith.constant 0 : index
    %9 = vector.load %arg4[%c0_6, %c0_7] : memref<256x64xbf16, #tpu.memory_space<vmem>>, vector<256x64xbf16>
    tpu.vector_store %arg4[%c0_6, %c0_7], %8 {strides = array<i32>} : memref<256x64xbf16, #tpu.memory_space<vmem>>, vector<256x64xbf16>,
    return
  }
  func.func @transform_0(%arg0: i32) -> (i32, i32) {
    %c0_i32 = arith.constant 0 : i32
    %c0_i32_0 = arith.constant 0 : i32
    return %arg0, %c0_i32 : i32, i32
  }
  func.func @transform_1(%arg0: i32) -> (i32, i32) {
    %c0_i32 = arith.constant 0 : i32
    %c0_i32_0 = arith.constant 0 : i32
    %c0_i32_1 = arith.constant 0 : i32
    return %c0_i32, %c0_i32_0 : i32, i32
  }
  func.func @transform_2(%arg0: i32) -> (i32, i32) {
    %c0_i32 = arith.constant 0 : i32
    %c0_i32_0 = arith.constant 0 : i32
    %c0_i32_1 = arith.constant 0 : i32
    return %c0_i32, %c0_i32_0 : i32, i32
  }
  func.func @transform_3(%arg0: i32) -> (i32, i32) {
    %c0_i32 = arith.constant 0 : i32
    %c0_i32_0 = arith.constant 0 : i32
    return %arg0, %c0_i32 : i32, i32
  }
}

</mosaic_0001>

<llo_original>
// kernel: tpu_custom_call.1
$region0: #{tpu_custom_call.1}
  #allocation0 [shape = 'u32[]', space=smem, size = 0x4, offset = 0x4, fixed_abs, tag = 'smem constant byte address 0x4 - core index']
  #allocation1 [shape = 'u32[72,128]{1,0:T(1,128)}', space=vmem, size = 0x9000, scoped, tag = 'internal scratch']
  %s0 = inlined_call_operand.vmem [shape: bf16[2048,147], index: 0, kind: input, shape index: {}]
  %s1 = inlined_call_operand.vmem [shape: bf16[147,64], index: 1, kind: input, shape index: {}]
  %s2 = inlined_call_operand.vmem [shape: f32[1,64], index: 2, kind: input, shape index: {}]
  %s3 = inlined_call_operand.vmem [shape: bf16[2048,64], index: 3, kind: output, shape index: {}]
  %s4 = sld [smem:[#allocation0]]
  $region45: #{tpu_custom_call.1} parent=0
    _
  %s6 = ssub.s32 1, %s4
  %s7 = scalar_select 0, %s6, %s4
  loop: start=0, step=1, limit=10
  $region2: #{tpu_custom_call.1} parent=0 // loop_pre_header
    _
  $region3: #{tpu_custom_call.1} parent=0 // loop_header
    %s9 = sphi 0, %s13
    %p10 = scmp.ge.s32.totalorder %s9, 10
    %s19 = sphi 0, %s21
    %s22 = sphi 0, %s19
    %s23 = sphi 0, %s22
    %s39 = sphi 0, %s23
    %s43 = sphi 0, %s43
    %s45 = sphi 0, %s43
    %s46 = sphi 0, %s45
    %s60 = sphi 0, %s46
    %s64 = sphi 0, %s64
    %s66 = sphi 0, %s64
    %s67 = sphi 0, %s66
    %s81 = sphi 0, %s67
    %s87 = sphi 0, %s89
    %s90 = sphi 0, %s87
    %s91 = sphi 0, %s90
    %s107 = sphi 0, %s91
  $region4: #{tpu_custom_call.1} parent=0 // loop_header_branch
    %12 = sbr.rel (%p10) target = $region8
  $region5: #{tpu_custom_call.1} parent=0 // loop_body
    %s14 = ssub.s32 %s9, 1
    %s15 = ssub.s32 %s9, 2
    %s16 = sadd.s32 %s9, 1
    %s17 = ssub.s32 %s9, %s16
    %p18 = scmp.eq.s32.totalorder %s17, 0
    %s20 = sadd.s32 %s19, 1
    %s21 = scalar_select %p18, %s19, %s20
    %p24 = pneg %p18
    %p25 = scmp.eq.s32.totalorder %s9, 7
    %p26 = por %p24, %p25
    %p27 = scmp.ne.s32.totalorder %s19, %s22
    %p28 = scmp.eq.s32.totalorder %s9, 0
    %p29 = por %p27, %p28
    %p30 = scmp.ne.s32.totalorder %s19, %s22
    %p31 = scmp.eq.s32.totalorder %s14, 7
    %p32 = por %p30, %p31
    %p33 = scmp.ne.s32.totalorder %s22, %s23
    %p34 = scmp.eq.s32.totalorder %s14, 0
    %p35 = por %p33, %p34
    %p36 = scmp.ne.s32.totalorder %s22, %s23
    %p37 = scmp.eq.s32.totalorder %s15, 7
    %p38 = por %p36, %p37
    %p40 = scmp.ne.s32.totalorder %s23, %s39
    %p41 = scmp.eq.s32.totalorder %s15, 0
    %p42 = por %p40, %p41
    %s44 = sadd.s32 %s43, 1
    %p47 = scmp.eq.s32.totalorder %s9, 7
    %p48 = scmp.ne.s32.totalorder %s43, %s45
    %p49 = scmp.eq.s32.totalorder %s9, 0
    %p50 = por %p48, %p49
    %p51 = scmp.ne.s32.totalorder %s43, %s45
    %p52 = scmp.eq.s32.totalorder %s14, 7
    %p53 = por %p51, %p52
    %p54 = scmp.ne.s32.totalorder %s45, %s46
    %p55 = scmp.eq.s32.totalorder %s14, 0
    %p56 = por %p54, %p55
    %p57 = scmp.ne.s32.totalorder %s45, %s46
    %p58 = scmp.eq.s32.totalorder %s15, 7
    %p59 = por %p57, %p58
    %p61 = scmp.ne.s32.totalorder %s46, %s60
    %p62 = scmp.eq.s32.totalorder %s15, 0
    %p63 = por %p61, %p62
    %s65 = sadd.s32 %s64, 1
    %p68 = scmp.eq.s32.totalorder %s9, 7
    %p69 = scmp.ne.s32.totalorder %s64, %s66
    %p70 = scmp.eq.s32.totalorder %s9, 0
    %p71 = por %p69, %p70
    %p72 = scmp.ne.s32.totalorder %s64, %s66
    %p73 = scmp.eq.s32.totalorder %s14, 7
    %p74 = por %p72, %p73
    %p75 = scmp.ne.s32.totalorder %s66, %s67
    %p76 = scmp.eq.s32.totalorder %s14, 0
    %p77 = por %p75, %p76
    %p78 = scmp.ne.s32.totalorder %s66, %s67
    %p79 = scmp.eq.s32.totalorder %s15, 7
    %p80 = por %p78, %p79
    %p82 = scmp.ne.s32.totalorder %s67, %s81
    %p83 = scmp.eq.s32.totalorder %s15, 0
    %p84 = por %p82, %p83
    %s85 = ssub.s32 %s9, %s16
    %p86 = scmp.eq.s32.totalorder %s85, 0
    %s88 = sadd.s32 %s87, 1
    %s89 = scalar_select %p86, %s87, %s88
    %p92 = pneg %p86
    %p93 = scmp.eq.s32.totalorder %s9, 7
    %p94 = por %p92, %p93
    %p95 = scmp.ne.s32.totalorder %s87, %s90
    %p96 = scmp.eq.s32.totalorder %s9, 0
    %p97 = por %p95, %p96
    %p98 = scmp.ne.s32.totalorder %s87, %s90
    %p99 = scmp.eq.s32.totalorder %s14, 7
    %p100 = por %p98, %p99
    %p101 = scmp.ne.s32.totalorder %s90, %s91
    %p102 = scmp.eq.s32.totalorder %s14, 0
    %p103 = por %p101, %p102
    %p104 = scmp.ne.s32.totalorder %s90, %s91
    %p105 = scmp.eq.s32.totalorder %s15, 7
    %p106 = por %p104, %p105
    %p108 = scmp.ne.s32.totalorder %s91, %s107
    %p109 = scmp.eq.s32.totalorder %s15, 0
    %p110 = por %p108, %p109
    %p111 = scmp.le.s32.totalorder 1, %s9
    %p112 = scmp.lt.s32.totalorder %s9, 9
    %p113 = pnand %p111, %p112
    %p114 = pneg %p113
    // Predicated region
    $region9: #{tpu_custom_call.1} parent=5 // pred_check
      _
    $region10: #{tpu_custom_call.1} parent=5 // pred_check_branch
      %116 = sbr.rel (%p113) target = $region12
    $region11: #{tpu_custom_call.1} parent=5 // pred_region
      %s117 = ssub.s32 %s9, 1
      // Predicated region
      $region13: #{tpu_custom_call.1} parent=11 // pred_check
        %p118 = pneg %p56
      $region14: #{tpu_custom_call.1} parent=11 // pred_check_branch
        %120 = sbr.rel (%p118) target = $region16
      $region15: #{tpu_custom_call.1} parent=11 // pred_region
        _
      $region16: #{tpu_custom_call.1} parent=11 // pred_fallthru
        _
      // Predicated region
      $region17: #{tpu_custom_call.1} parent=11 // pred_check
        %p121 = pneg %p77
      $region18: #{tpu_custom_call.1} parent=11 // pred_check_branch
        %123 = sbr.rel (%p121) target = $region20
      $region19: #{tpu_custom_call.1} parent=11 // pred_region
        _
      $region20: #{tpu_custom_call.1} parent=11 // pred_fallthru
        _
    $region12: #{tpu_custom_call.1} parent=5 // pred_fallthru
      _
    %p124 = scmp.lt.s32.totalorder %s9, 8
    // Predicated region
    $region21: #{tpu_custom_call.1} parent=5 // pred_check
      %p125 = pneg %p124
    $region22: #{tpu_custom_call.1} parent=5 // pred_check_branch
      %127 = sbr.rel (%p125) target = $region24
    $region23: #{tpu_custom_call.1} parent=5 // pred_region
      // Predicated region
      $region25: #{tpu_custom_call.1} parent=23 // pred_check
        %p128 = pneg %p29
      $region26: #{tpu_custom_call.1} parent=23 // pred_check_branch
        %130 = sbr.rel (%p128) target = $region28
      $region27: #{tpu_custom_call.1} parent=23 // pred_region
        %s131 = smul.u32 32, %s9
        %p132 = scmp.lt.s32.totalorder %s131, 255
        %s133 = scalar_select %p132, %s131, 255
        %s134 = smul.addr %s133, 2
        %s135 = smul.addr %s134, 4
        %s136 = scalar_lea.vmem %s0, %s135
        %s137 = smul.u32 32, %s9
      $region28: #{tpu_custom_call.1} parent=23 // pred_fallthru
        _
    $region24: #{tpu_custom_call.1} parent=5 // pred_fallthru
      _
    %p138 = scmp.le.s32.totalorder 1, %s9
    %p139 = scmp.lt.s32.totalorder %s9, 9
    %p140 = pnand %p138, %p139
    %p141 = pneg %p140
    // Predicated region
    $region29: #{tpu_custom_call.1} parent=5 // pred_check
      _
    $region30: #{tpu_custom_call.1} parent=5 // pred_check_branch
      %143 = sbr.rel (%p140) target = $region32
    $region31: #{tpu_custom_call.1} parent=5 // pred_region
      %s144 = ssub.s32 %s9, 1
      %s145 = smul.u32 32, %s14
      %p146 = scmp.lt.s32.totalorder %s145, 255
      %s147 = scalar_select %p146, %s145, 255
      %s148 = smul.addr %s147, 2
      %s149 = smul.addr %s148, 4
      %s150 = scalar_lea.vmem %s0, %s149
      %p151 = pneg %p35
      %p152 = pneg %p32
      %p153 = pneg %p56
      %p154 = pneg %p53
      %p155 = pneg %p77
      %p156 = pneg %p74
      %p157 = pneg %p103
      %p158 = pneg %p100
      %s159 = smul.u32 32, %s14
      %p160 = scmp.lt.s32.totalorder %s159, 255
      %s161 = scalar_select %p160, %s159, 255
      %s162 = smul.addr %s161, 4
      %s163 = scalar_lea.vmem %s3, %s162
      %s164 = smul.u32 32, %s14
      %p165 = scmp.lt.s32.totalorder %s164, 255
      %s166 = scalar_select %p165, %s164, 255
      %s167 = smul.addr %s166, 2
      %s168 = smul.addr %s167, 4
      %s169 = scalar_lea.vmem %s0, %s168
      %s170 = smul.u32 32, %s14
      %s171 = smul.u32 32, %s14
      %p172 = scmp.lt.s32.totalorder %s171, 255
      %s173 = scalar_select %p172, %s171, 255
      %s174 = smul.addr %s173, 4
      %s175 = scalar_lea.vmem %s3, %s174
      %s176 = smul.u32 32, %s14
      %v178 = vld [vmem:[%s169] sm:$0xff]
      %v179 = vld [vmem:[%s169 + $0x8] sm:$0xff]
      %v180 = vld [vmem:[%s169 + $0x10] sm:$0xff]
      %v181 = vld [vmem:[%s169 + $0x18] sm:$0xff]
      %v182 = vld [vmem:[%s169 + $0x20] sm:$0xff]
      %v183 = vld [vmem:[%s169 + $0x28] sm:$0xff]
      %v184 = vld [vmem:[%s169 + $0x30] sm:$0xff]
      %v185 = vld [vmem:[%s169 + $0x38] sm:$0xff]
      %v186 = vld [vmem:[%s169 + $0x40] sm:$0xff]
      %v187 = vld [vmem:[%s169 + $0x48] sm:$0xff]
      %v188 = vld [vmem:[%s169 + $0x50] sm:$0xff]
      %v189 = vld [vmem:[%s169 + $0x58] sm:$0xff]
      %v190 = vld [vmem:[%s169 + $0x60] sm:$0xff]
      %v191 = vld [vmem:[%s169 + $0x68] sm:$0xff]
      %v192 = vld [vmem:[%s169 + $0x70] sm:$0xff]
      %v193 = vld [vmem:[%s169 + $0x78] sm:$0xff]
      %v194 = vld [vmem:[%s169 + $0x80] sm:$0xff]
      %v195 = vld [vmem:[%s169 + $0x88] sm:$0xff]
      %v196 = vld [vmem:[%s169 + $0x90] sm:$0xff]
      %v197 = vld [vmem:[%s169 + $0x98] sm:$0xff]
      %v198 = vld [vmem:[%s169 + $0xa0] sm:$0xff]
      %v199 = vld [vmem:[%s169 + $0xa8] sm:$0xff]
      %v200 = vld [vmem:[%s169 + $0xb0] sm:$0xff]
      %v201 = vld [vmem:[%s169 + $0xb8] sm:$0xff]
      %v202 = vld [vmem:[%s169 + $0xc0] sm:$0xff]
      %v203 = vld [vmem:[%s169 + $0xc8] sm:$0xff]
      %v204 = vld [vmem:[%s169 + $0xd0] sm:$0xff]
      %v205 = vld [vmem:[%s169 + $0xd8] sm:$0xff]
      %v206 = vld [vmem:[%s169 + $0xe0] sm:$0xff]
      %v207 = vld [vmem:[%s169 + $0xe8] sm:$0xff]
      %v208 = vld [vmem:[%s169 + $0xf0] sm:$0xff]
      %v209 = vld [vmem:[%s169 + $0xf8] sm:$0xff]
      %v210 = vld [vmem:[%s1] sm:$0xf]
      %v211 = vld [vmem:[%s1 + $0x4] sm:$0xf]
      %v212 = vld [vmem:[%s1 + $0x8] sm:$0xf]
      %v213 = vld [vmem:[%s1 + $0xc] sm:$0xf]
      %v214 = vld [vmem:[%s1 + $0x10] sm:$0xf]
      %v215 = vld [vmem:[%s1 + $0x14] sm:$0xf]
      %v216 = vld [vmem:[%s1 + $0x18] sm:$0xf]
      %v217 = vld [vmem:[%s1 + $0x1c] sm:$0xf]
      %v218 = vld [vmem:[%s1 + $0x20] sm:$0xf]
      %v219 = vld [vmem:[%s1 + $0x24] sm:$0xf]
      %v220 = vld [vmem:[%s1 + $0x28] sm:$0xf]
      %v221 = vld [vmem:[%s1 + $0x2c] sm:$0xf]
      %v222 = vld [vmem:[%s1 + $0x30] sm:$0xf]
      %v223 = vld [vmem:[%s1 + $0x34] sm:$0xf]
      %v224 = vld [vmem:[%s1 + $0x38] sm:$0xf]
      %v225 = vld [vmem:[%s1 + $0x3c] sm:$0xf]
      %v226 = vld [vmem:[%s1 + $0x40] sm:$0xf]
      %v227 = vld [vmem:[%s1 + $0x44] sm:$0xf]
      %v228 = vld [vmem:[%s1 + $0x48] sm:$0x3]
      %v229 = vld [vmem:[%s2] sm:$0x1]
      %v231 = vperm.slane %v229, 0
      %v265 = vunpack.c.l.b16 %v178
      %v266 = vunpack.c.h.b16 %v178
      %v267 = vunpack.c.l.b16 %v179
      %v268 = vunpack.c.h.b16 %v179
      %v269 = vunpack.c.l.b16 %v180
      %v270 = vunpack.c.h.b16 %v180
      %v271 = vunpack.c.l.b16 %v181
      %v272 = vunpack.c.h.b16 %v181
      %v273 = vunpack.c.l.b16 %v182
      %v274 = vunpack.c.h.b16 %v182
      %v275 = vunpack.c.l.b16 %v183
      %v276 = vunpack.c.h.b16 %v183
      %v277 = vunpack.c.l.b16 %v184
      %v278 = vunpack.c.h.b16 %v184
      %v279 = vunpack.c.l.b16 %v185
      %v280 = vunpack.c.h.b16 %v185
      %v281 = vunpack.c.l.b16 %v186
      %v282 = vunpack.c.h.b16 %v186
      %v283 = vunpack.c.l.b16 %v187
      %v284 = vunpack.c.h.b16 %v187
      %v285 = vunpack.c.l.b16 %v188
      %v286 = vunpack.c.h.b16 %v188
      %v287 = vunpack.c.l.b16 %v189
      %v288 = vunpack.c.h.b16 %v189
      %v289 = vunpack.c.l.b16 %v190
      %v290 = vunpack.c.h.b16 %v190
      %v291 = vunpack.c.l.b16 %v191
      %v292 = vunpack.c.h.b16 %v191
      %v293 = vunpack.c.l.b16 %v192
      %v294 = vunpack.c.h.b16 %v192
      %v295 = vunpack.c.l.b16 %v193
      %v296 = vunpack.c.h.b16 %v193
      %v297 = vunpack.c.l.b16 %v194
      %v298 = vunpack.c.h.b16 %v194
      %v299 = vunpack.c.l.b16 %v195
      %v300 = vunpack.c.h.b16 %v195
      %v301 = vunpack.c.l.b16 %v196
      %v302 = vunpack.c.h.b16 %v196
      %v303 = vunpack.c.l.b16 %v197
      %v304 = vunpack.c.h.b16 %v197
      %v305 = vunpack.c.l.b16 %v198
      %v306 = vunpack.c.h.b16 %v198
      %v307 = vunpack.c.l.b16 %v199
      %v308 = vunpack.c.h.b16 %v199
      %v309 = vunpack.c.l.b16 %v200
      %v310 = vunpack.c.h.b16 %v200
      %v311 = vunpack.c.l.b16 %v201
      %v312 = vunpack.c.h.b16 %v201
      %v313 = vunpack.c.l.b16 %v202
      %v314 = vunpack.c.h.b16 %v202
      %v315 = vunpack.c.l.b16 %v203
      %v316 = vunpack.c.h.b16 %v203
      %v317 = vunpack.c.l.b16 %v204
      %v318 = vunpack.c.h.b16 %v204
      %v319 = vunpack.c.l.b16 %v205
      %v320 = vunpack.c.h.b16 %v205
      %v321 = vunpack.c.l.b16 %v206
      %v322 = vunpack.c.h.b16 %v206
      %v323 = vunpack.c.l.b16 %v207
      %v324 = vunpack.c.h.b16 %v207
      %v325 = vunpack.c.l.b16 %v208
      %v326 = vunpack.c.h.b16 %v208
      %v327 = vunpack.c.l.b16 %v209
      %v328 = vunpack.c.h.b16 %v209
      %v329 = vpack.c.b16 %v267, %v265
      %v330 = vpack.c.b16 %v268, %v266
      %v331 = vpack.c.b16 %v271, %v269
      %v332 = vpack.c.b16 %v272, %v270
      %v333 = vpack.c.b16 %v275, %v273
      %v334 = vpack.c.b16 %v276, %v274
      %v335 = vpack.c.b16 %v279, %v277
      %v336 = vpack.c.b16 %v280, %v278
      %v337 = vpack.c.b16 %v283, %v281
      %v338 = vpack.c.b16 %v284, %v282
      %v339 = vpack.c.b16 %v287, %v285
      %v340 = vpack.c.b16 %v288, %v286
      %v341 = vpack.c.b16 %v291, %v289
      %v342 = vpack.c.b16 %v292, %v290
      %v343 = vpack.c.b16 %v295, %v293
      %v344 = vpack.c.b16 %v296, %v294
      %v345 = vpack.c.b16 %v299, %v297
      %v346 = vpack.c.b16 %v300, %v298
      %v347 = vpack.c.b16 %v303, %v301
      %v348 = vpack.c.b16 %v304, %v302
      %v349 = vpack.c.b16 %v307, %v305
      %v350 = vpack.c.b16 %v308, %v306
      %v351 = vpack.c.b16 %v311, %v309
      %v352 = vpack.c.b16 %v312, %v310
      %v353 = vpack.c.b16 %v315, %v313
      %v354 = vpack.c.b16 %v316, %v314
      %v355 = vpack.c.b16 %v319, %v317
      %v356 = vpack.c.b16 %v320, %v318
      %v357 = vpack.c.b16 %v323, %v321
      %v358 = vpack.c.b16 %v324, %v322
      %v359 = vpack.c.b16 %v327, %v325
      %v360 = vpack.c.b16 %v328, %v326
      %v396 = vunpack.c.l.b16 %v210
      %v397 = vunpack.c.l.b16 %v211
      %v398 = vunpack.c.l.b16 %v212
      %v399 = vunpack.c.l.b16 %v213
      %v400 = vunpack.c.l.b16 %v214
      %v401 = vunpack.c.l.b16 %v215
      %v402 = vunpack.c.l.b16 %v216
      %v403 = vunpack.c.l.b16 %v217
      %v404 = vunpack.c.l.b16 %v218
      %v405 = vunpack.c.l.b16 %v219
      %v406 = vunpack.c.l.b16 %v220
      %v407 = vunpack.c.l.b16 %v221
      %v408 = vunpack.c.l.b16 %v222
      %v409 = vunpack.c.l.b16 %v223
      %v410 = vunpack.c.l.b16 %v224
      %v411 = vunpack.c.l.b16 %v225
      %v412 = vunpack.c.l.b16 %v226
      %v413 = vunpack.c.l.b16 %v227
      %v414 = vunpack.c.l.b16 %v228
      %v415 = vpack.c.b16 %v397, %v396
      %v416 = vpack.c.b16 %v399, %v398
      %v417 = vpack.c.b16 %v401, %v400
      %v418 = vpack.c.b16 %v403, %v402
      %v419 = vpack.c.b16 %v405, %v404
      %v420 = vpack.c.b16 %v407, %v406
      %v421 = vpack.c.b16 %v409, %v408
      %v422 = vpack.c.b16 %v411, %v410
      %v423 = vpack.c.b16 %v413, %v412
      %v424 = vpack.c.b16 %v414, %v414
      %vm434 = vcmask 154624
      %v436 = vsel %vm434, %v330, 0
      %v439 = vsel %vm434, %v332, 0
      %v442 = vsel %vm434, %v334, 0
      %v445 = vsel %vm434, %v336, 0
      %v448 = vsel %vm434, %v338, 0
      %v451 = vsel %vm434, %v340, 0
      %v454 = vsel %vm434, %v342, 0
      %v457 = vsel %vm434, %v344, 0
      %v460 = vsel %vm434, %v346, 0
      %v463 = vsel %vm434, %v348, 0
      %v466 = vsel %vm434, %v350, 0
      %v469 = vsel %vm434, %v352, 0
      %v472 = vsel %vm434, %v354, 0
      %v475 = vsel %vm434, %v356, 0
      %v478 = vsel %vm434, %v358, 0
      %v481 = vsel %vm434, %v360, 0
      %vm483 = vcmask 1040384
      %vm484 = vcmask 1041408
      %v485 = vsel %vm483, 4294967295, 65535
      %v486 = vsel %vm484, %v485, 0
      %v488 = vand.u32 %v424, %v486
      %490 = vmatpush.bf16.msra.mxu0 %v422
      %491 = vmatpush.bf16.msra.mxu0 %v421
      %492 = vmatpush.bf16.msra.mxu0 %v420
      %493 = vmatpush.bf16.msra.mxu0 %v419
      %494 = vmatpush.bf16.msra.mxu0 %v418
      %495 = vmatpush.bf16.msra.mxu0 %v417
      %496 = vmatpush.bf16.msra.mxu0 %v416
      %497 = vmatpush.bf16.msra.mxu0 %v415
      %498 = vmatmul.bf16.gmra.mxu0 %v329
      %v499 = vpop.f32.mrf.mxu0
      %v500 = vadd.f32 %v231, %v499
      %v501 = vpop.f32.mrf.mxu0
      %v502 = vadd.f32 %v231, %v501
      %503 = vmatmul.bf16.gmra.mxu0 %v331
      %v504 = vpop.f32.mrf.mxu0
      %v505 = vadd.f32 %v231, %v504
      %v506 = vpop.f32.mrf.mxu0
      %v507 = vadd.f32 %v231, %v506
      %508 = vmatmul.bf16.gmra.mxu0 %v333
      %v509 = vpop.f32.mrf.mxu0
      %v510 = vadd.f32 %v231, %v509
      %v511 = vpop.f32.mrf.mxu0
      %v512 = vadd.f32 %v231, %v511
      %513 = vmatmul.bf16.gmra.mxu0 %v335
      %v514 = vpop.f32.mrf.mxu0
      %v515 = vadd.f32 %v231, %v514
      %v516 = vpop.f32.mrf.mxu0
      %v517 = vadd.f32 %v231, %v516
      %518 = vmatmul.bf16.gmra.mxu0 %v337
      %v519 = vpop.f32.mrf.mxu0
      %v520 = vadd.f32 %v231, %v519
      %v521 = vpop.f32.mrf.mxu0
      %v522 = vadd.f32 %v231, %v521
      %523 = vmatmul.bf16.gmra.mxu0 %v339
      %v524 = vpop.f32.mrf.mxu0
      %v525 = vadd.f32 %v231, %v524
      %v526 = vpop.f32.mrf.mxu0
      %v527 = vadd.f32 %v231, %v526
      %528 = vmatmul.bf16.gmra.mxu0 %v341
      %v529 = vpop.f32.mrf.mxu0
      %v530 = vadd.f32 %v231, %v529
      %v531 = vpop.f32.mrf.mxu0
      %v532 = vadd.f32 %v231, %v531
      %533 = vmatmul.bf16.gmra.mxu0 %v343
      %v534 = vpop.f32.mrf.mxu0
      %v535 = vadd.f32 %v231, %v534
      %v536 = vpop.f32.mrf.mxu0
      %v537 = vadd.f32 %v231, %v536
      %538 = vmatmul.bf16.gmra.mxu0 %v345
      %v539 = vpop.f32.mrf.mxu0
      %v540 = vadd.f32 %v231, %v539
      %v541 = vpop.f32.mrf.mxu0
      %v542 = vadd.f32 %v231, %v541
      %543 = vmatmul.bf16.gmra.mxu0 %v347
      %v544 = vpop.f32.mrf.mxu0
      %v545 = vadd.f32 %v231, %v544
      %v546 = vpop.f32.mrf.mxu0
      %v547 = vadd.f32 %v231, %v546
      %548 = vmatmul.bf16.gmra.mxu0 %v349
      %v549 = vpop.f32.mrf.mxu0
      %v550 = vadd.f32 %v231, %v549
      %v551 = vpop.f32.mrf.mxu0
      %v552 = vadd.f32 %v231, %v551
      %553 = vmatmul.bf16.gmra.mxu0 %v351
      %v554 = vpop.f32.mrf.mxu0
      %v555 = vadd.f32 %v231, %v554
      %v556 = vpop.f32.mrf.mxu0
      %v557 = vadd.f32 %v231, %v556
      %558 = vmatmul.bf16.gmra.mxu0 %v353
      %v559 = vpop.f32.mrf.mxu0
      %v560 = vadd.f32 %v231, %v559
      %v561 = vpop.f32.mrf.mxu0
      %v562 = vadd.f32 %v231, %v561
      %563 = vmatmul.bf16.gmra.mxu0 %v355
      %v564 = vpop.f32.mrf.mxu0
      %v565 = vadd.f32 %v231, %v564
      %v566 = vpop.f32.mrf.mxu0
      %v567 = vadd.f32 %v231, %v566
      %568 = vmatmul.bf16.gmra.mxu0 %v357
      %v569 = vpop.f32.mrf.mxu0
      %v570 = vadd.f32 %v231, %v569
      %v571 = vpop.f32.mrf.mxu0
      %v572 = vadd.f32 %v231, %v571
      %573 = vmatmul.bf16.gmra.mxu0 %v359
      %v574 = vpop.f32.mrf.mxu0
      %v575 = vadd.f32 %v231, %v574
      %v576 = vpop.f32.mrf.mxu0
      %v577 = vadd.f32 %v231, %v576
      %578 = vdwg.mxu0
      %579 = vmatpush.bf16.msra.mxu0 0
      %580 = vmatpush.bf16.msra.mxu0 0
      %581 = vmatpush.bf16.msra.mxu0 0
      %582 = vmatpush.bf16.msra.mxu0 0
      %583 = vmatpush.bf16.msra.mxu0 0
      %584 = vmatpush.bf16.msra.mxu0 0
      %585 = vmatpush.bf16.msra.mxu0 %v488
      %586 = vmatpush.bf16.msra.mxu0 %v423
      %587 = vmatmul.bf16.gmra.mxu0 %v436
      %v588 = vpop.f32.mrf.mxu0
      %v589 = vadd.f32 %v500, %v588
      %v590 = vpop.f32.mrf.mxu0
      %v591 = vadd.f32 %v502, %v590
      %592 = vmatmul.bf16.gmra.mxu0 %v439
      %v593 = vpop.f32.mrf.mxu0
      %v594 = vadd.f32 %v505, %v593
      %v595 = vpop.f32.mrf.mxu0
      %v596 = vadd.f32 %v507, %v595
      %597 = vmatmul.bf16.gmra.mxu0 %v442
      %v598 = vpop.f32.mrf.mxu0
      %v599 = vadd.f32 %v510, %v598
      %v600 = vpop.f32.mrf.mxu0
      %v601 = vadd.f32 %v512, %v600
      %602 = vmatmul.bf16.gmra.mxu0 %v445
      %v603 = vpop.f32.mrf.mxu0
      %v604 = vadd.f32 %v515, %v603
      %v605 = vpop.f32.mrf.mxu0
      %v606 = vadd.f32 %v517, %v605
      %607 = vmatmul.bf16.gmra.mxu0 %v448
      %v608 = vpop.f32.mrf.mxu0
      %v609 = vadd.f32 %v520, %v608
      %v610 = vpop.f32.mrf.mxu0
      %v611 = vadd.f32 %v522, %v610
      %612 = vmatmul.bf16.gmra.mxu0 %v451
      %v613 = vpop.f32.mrf.mxu0
      %v614 = vadd.f32 %v525, %v613
      %v615 = vpop.f32.mrf.mxu0
      %v616 = vadd.f32 %v527, %v615
      %617 = vmatmul.bf16.gmra.mxu0 %v454
      %v618 = vpop.f32.mrf.mxu0
      %v619 = vadd.f32 %v530, %v618
      %v620 = vpop.f32.mrf.mxu0
      %v621 = vadd.f32 %v532, %v620
      %622 = vmatmul.bf16.gmra.mxu0 %v457
      %v623 = vpop.f32.mrf.mxu0
      %v624 = vadd.f32 %v535, %v623
      %v625 = vpop.f32.mrf.mxu0
      %v626 = vadd.f32 %v537, %v625
      %627 = vmatmul.bf16.gmra.mxu0 %v460
      %v628 = vpop.f32.mrf.mxu0
      %v629 = vadd.f32 %v540, %v628
      %v630 = vpop.f32.mrf.mxu0
      %v631 = vadd.f32 %v542, %v630
      %632 = vmatmul.bf16.gmra.mxu0 %v463
      %v633 = vpop.f32.mrf.mxu0
      %v634 = vadd.f32 %v545, %v633
      %v635 = vpop.f32.mrf.mxu0
      %v636 = vadd.f32 %v547, %v635
      %637 = vmatmul.bf16.gmra.mxu0 %v466
      %v638 = vpop.f32.mrf.mxu0
      %v639 = vadd.f32 %v550, %v638
      %v640 = vpop.f32.mrf.mxu0
      %v641 = vadd.f32 %v552, %v640
      %642 = vmatmul.bf16.gmra.mxu0 %v469
      %v643 = vpop.f32.mrf.mxu0
      %v644 = vadd.f32 %v555, %v643
      %v645 = vpop.f32.mrf.mxu0
      %v646 = vadd.f32 %v557, %v645
      %647 = vmatmul.bf16.gmra.mxu0 %v472
      %v648 = vpop.f32.mrf.mxu0
      %v649 = vadd.f32 %v560, %v648
      %v650 = vpop.f32.mrf.mxu0
      %v651 = vadd.f32 %v562, %v650
      %652 = vmatmul.bf16.gmra.mxu0 %v475
      %v653 = vpop.f32.mrf.mxu0
      %v654 = vadd.f32 %v565, %v653
      %v655 = vpop.f32.mrf.mxu0
      %v656 = vadd.f32 %v567, %v655
      %657 = vmatmul.bf16.gmra.mxu0 %v478
      %v658 = vpop.f32.mrf.mxu0
      %v659 = vadd.f32 %v570, %v658
      %v660 = vpop.f32.mrf.mxu0
      %v661 = vadd.f32 %v572, %v660
      %662 = vmatmul.bf16.gmra.mxu0 %v481
      %v663 = vpop.f32.mrf.mxu0
      %v664 = vadd.f32 %v575, %v663
      %v665 = vpop.f32.mrf.mxu0
      %v666 = vadd.f32 %v577, %v665
      %667 = vdwg.mxu0
      %v668 = vmax.f32 %v589, 0.0
      %v669 = vmax.f32 %v591, 0.0
      %v670 = vmax.f32 %v594, 0.0
      %v671 = vmax.f32 %v596, 0.0
      %v672 = vmax.f32 %v599, 0.0
      %v673 = vmax.f32 %v601, 0.0
      %v674 = vmax.f32 %v604, 0.0
      %v675 = vmax.f32 %v606, 0.0
      %v676 = vmax.f32 %v609, 0.0
      %v677 = vmax.f32 %v611, 0.0
      %v678 = vmax.f32 %v614, 0.0
      %v679 = vmax.f32 %v616, 0.0
      %v680 = vmax.f32 %v619, 0.0
      %v681 = vmax.f32 %v621, 0.0
      %v682 = vmax.f32 %v624, 0.0
      %v683 = vmax.f32 %v626, 0.0
      %v684 = vmax.f32 %v629, 0.0
      %v685 = vmax.f32 %v631, 0.0
      %v686 = vmax.f32 %v634, 0.0
      %v687 = vmax.f32 %v636, 0.0
      %v688 = vmax.f32 %v639, 0.0
      %v689 = vmax.f32 %v641, 0.0
      %v690 = vmax.f32 %v644, 0.0
      %v691 = vmax.f32 %v646, 0.0
      %v692 = vmax.f32 %v649, 0.0
      %v693 = vmax.f32 %v651, 0.0
      %v694 = vmax.f32 %v654, 0.0
      %v695 = vmax.f32 %v656, 0.0
      %v696 = vmax.f32 %v659, 0.0
      %v697 = vmax.f32 %v661, 0.0
      %v698 = vmax.f32 %v664, 0.0
      %v699 = vmax.f32 %v666, 0.0
      %v700 = vpack.c.bf16 %v668, %v668
      %v701 = vpack.c.bf16 %v669, %v669
      %v702 = vpack.c.bf16 %v670, %v670
      %v703 = vpack.c.bf16 %v671, %v671
      %v704 = vpack.c.bf16 %v672, %v672
      %v705 = vpack.c.bf16 %v673, %v673
      %v706 = vpack.c.bf16 %v674, %v674
      %v707 = vpack.c.bf16 %v675, %v675
      %v708 = vpack.c.bf16 %v676, %v676
      %v709 = vpack.c.bf16 %v677, %v677
      %v710 = vpack.c.bf16 %v678, %v678
      %v711 = vpack.c.bf16 %v679, %v679
      %v712 = vpack.c.bf16 %v680, %v680
      %v713 = vpack.c.bf16 %v681, %v681
      %v714 = vpack.c.bf16 %v682, %v682
      %v715 = vpack.c.bf16 %v683, %v683
      %v716 = vpack.c.bf16 %v684, %v684
      %v717 = vpack.c.bf16 %v685, %v685
      %v718 = vpack.c.bf16 %v686, %v686
      %v719 = vpack.c.bf16 %v687, %v687
      %v720 = vpack.c.bf16 %v688, %v688
      %v721 = vpack.c.bf16 %v689, %v689
      %v722 = vpack.c.bf16 %v690, %v690
      %v723 = vpack.c.bf16 %v691, %v691
      %v724 = vpack.c.bf16 %v692, %v692
      %v725 = vpack.c.bf16 %v693, %v693
      %v726 = vpack.c.bf16 %v694, %v694
      %v727 = vpack.c.bf16 %v695, %v695
      %v728 = vpack.c.bf16 %v696, %v696
      %v729 = vpack.c.bf16 %v697, %v697
      %v730 = vpack.c.bf16 %v698, %v698
      %v731 = vpack.c.bf16 %v699, %v699
      %vm732 = vcmask 519168
      %733 = vst.msk [vmem:[%s175] sm:$0xf] %vm732, %v700
      %734 = vst.msk [vmem:[%s175 + $0x4] sm:$0xf] %vm732, %v701
      %735 = vst.msk [vmem:[%s175 + $0x8] sm:$0xf] %vm732, %v702
      %736 = vst.msk [vmem:[%s175 + $0xc] sm:$0xf] %vm732, %v703
      %737 = vst.msk [vmem:[%s175 + $0x10] sm:$0xf] %vm732, %v704
      %738 = vst.msk [vmem:[%s175 + $0x14] sm:$0xf] %vm732, %v705
      %739 = vst.msk [vmem:[%s175 + $0x18] sm:$0xf] %vm732, %v706
      %740 = vst.msk [vmem:[%s175 + $0x1c] sm:$0xf] %vm732, %v707
      %741 = vst.msk [vmem:[%s175 + $0x20] sm:$0xf] %vm732, %v708
      %742 = vst.msk [vmem:[%s175 + $0x24] sm:$0xf] %vm732, %v709
      %743 = vst.msk [vmem:[%s175 + $0x28] sm:$0xf] %vm732, %v710
      %744 = vst.msk [vmem:[%s175 + $0x2c] sm:$0xf] %vm732, %v711
      %745 = vst.msk [vmem:[%s175 + $0x30] sm:$0xf] %vm732, %v712
      %746 = vst.msk [vmem:[%s175 + $0x34] sm:$0xf] %vm732, %v713
      %747 = vst.msk [vmem:[%s175 + $0x38] sm:$0xf] %vm732, %v714
      %748 = vst.msk [vmem:[%s175 + $0x3c] sm:$0xf] %vm732, %v715
      %749 = vst.msk [vmem:[%s175 + $0x40] sm:$0xf] %vm732, %v716
      %750 = vst.msk [vmem:[%s175 + $0x44] sm:$0xf] %vm732, %v717
      %751 = vst.msk [vmem:[%s175 + $0x48] sm:$0xf] %vm732, %v718
      %752 = vst.msk [vmem:[%s175 + $0x4c] sm:$0xf] %vm732, %v719
      %753 = vst.msk [vmem:[%s175 + $0x50] sm:$0xf] %vm732, %v720
      %754 = vst.msk [vmem:[%s175 + $0x54] sm:$0xf] %vm732, %v721
      %755 = vst.msk [vmem:[%s175 + $0x58] sm:$0xf] %vm732, %v722
      %756 = vst.msk [vmem:[%s175 + $0x5c] sm:$0xf] %vm732, %v723
      %757 = vst.msk [vmem:[%s175 + $0x60] sm:$0xf] %vm732, %v724
      %758 = vst.msk [vmem:[%s175 + $0x64] sm:$0xf] %vm732, %v725
      %759 = vst.msk [vmem:[%s175 + $0x68] sm:$0xf] %vm732, %v726
      %760 = vst.msk [vmem:[%s175 + $0x6c] sm:$0xf] %vm732, %v727
      %761 = vst.msk [vmem:[%s175 + $0x70] sm:$0xf] %vm732, %v728
      %762 = vst.msk [vmem:[%s175 + $0x74] sm:$0xf] %vm732, %v729
      %763 = vst.msk [vmem:[%s175 + $0x78] sm:$0xf] %vm732, %v730
      %764 = vst.msk [vmem:[%s175 + $0x7c] sm:$0xf] %vm732, %v731
      %s765 = smul.u32 32, %s14
      %p766 = scmp.lt.s32.totalorder %s765, 255
      %s767 = scalar_select %p766, %s765, 255
      %s768 = smul.addr %s767, 4
      %s769 = scalar_lea.vmem %s3, %s768
      // Predicated region
      $region33: #{tpu_custom_call.1} parent=31 // pred_check
        %p770 = pneg %p100
      $region34: #{tpu_custom_call.1} parent=31 // pred_check_branch
        %772 = sbr.rel (%p770) target = $region36
      $region35: #{tpu_custom_call.1} parent=31 // pred_region
        %s773 = smul.u32 32, %s14
      $region36: #{tpu_custom_call.1} parent=31 // pred_fallthru
        _
    $region32: #{tpu_custom_call.1} parent=5 // pred_fallthru
      _
    %p774 = scmp.le.s32.totalorder 2, %s9
    // Predicated region
    $region37: #{tpu_custom_call.1} parent=5 // pred_check
      %p775 = pneg %p774
    $region38: #{tpu_custom_call.1} parent=5 // pred_check_branch
      %777 = sbr.rel (%p775) target = $region40
    $region39: #{tpu_custom_call.1} parent=5 // pred_region
      %s778 = ssub.s32 %s9, 2
      // Predicated region
      $region41: #{tpu_custom_call.1} parent=39 // pred_check
        %p779 = pneg %p106
      $region42: #{tpu_custom_call.1} parent=39 // pred_check_branch
        %781 = sbr.rel (%p779) target = $region44
      $region43: #{tpu_custom_call.1} parent=39 // pred_region
        %s782 = smul.u32 32, %s15
        %p783 = scmp.lt.s32.totalorder %s782, 255
        %s784 = scalar_select %p783, %s782, 255
        %s785 = smul.addr %s784, 4
        %s786 = scalar_lea.vmem %s3, %s785
      $region44: #{tpu_custom_call.1} parent=39 // pred_fallthru
        _
    $region40: #{tpu_custom_call.1} parent=5 // pred_fallthru
      _
  $region6: #{tpu_custom_call.1} parent=0 // loop_footer
    %s13 = sadd.s32 1, %s9
  $region7: #{tpu_custom_call.1} parent=0 // loop_footer_branch
    %8 = sbr.rel target = $region3
  $region8: #{tpu_custom_call.1} parent=0 // loop_exit
    _

</llo_original>
